<compile_context>
chip_gen: v7x
topology: tpu7x:2x2x1
jax: 0.10.0
libtpu: 0.0.40
codegen_flags: <defaults>
</compile_context>

<pallas_src>
import math
import functools

import jax
import jax.numpy as jnp
from jax import lax
from jax.experimental import pallas as pl
from jax.experimental.pallas import tpu as pltpu


# ------------------------------- helpers ---------------------------------- #

def _round_up(x, m):
    return (x + m - 1) // m * m


def _cdiv(a, b):
    return -(-a // b)


@functools.lru_cache(maxsize=None)
def _vmem_capacity_bytes():
    """Physical VMEM per TensorCore (generation-aware); conservative fallback."""
    try:
        cap = getattr(pltpu.get_tpu_info(), "vmem_capacity_bytes", None)
        if cap:
            return int(cap)
    except Exception:
        pass
    return 64 * 1024 * 1024            # safe default (v7x-sized)


def _tile_footprint(shape, dtype):
    """VMEM bytes of one buffer after (sublane, lane)-tile rounding."""
    it = jnp.dtype(dtype).itemsize
    sublane = 8 * max(1, 4 // it)      # 8 for f32, 16 for bf16
    if len(shape) == 1:
        lead, rows, cols = 1, 1, int(shape[0])
    else:
        lead = 1
        for d in shape[:-2]:
            lead *= int(d)
        rows, cols = int(shape[-2]), int(shape[-1])
    return lead * _round_up(rows, sublane) * _round_up(cols, 128) * it


# ----------------------------- Pallas kernel ------------------------------ #

def _make_conv_head_kernel(shifts):
    """Fused 3x3 SAME conv (both heads on the channel axis) over a flattened,
    row-stride-padded image, expressed as len(shifts) row-shifted matmuls
    accumulated into a bias-initialized f32 register tile.

    Refs:
      x_ref: (1, Lp, Kc)       whole folded/flattened image for batch b
      w_ref: (T, Kc, Npad)     per-shift weights, T = len(shifts)
      b_ref: (1, Npad)         fused bias (f32)
      o_ref: (1, tm, Npad)     output rows [q*tm, (q+1)*tm)
    """
    shifts = tuple(int(s) for s in shifts)

    def kernel(x_ref, w_ref, b_ref, o_ref):
        tm = o_ref.shape[1]
        n_pad = o_ref.shape[2]
        base = pl.multiple_of(pl.program_id(1) * tm, 8)
        # Bias-initialized accumulator: saves the epilogue broadcast + add.
        acc = jnp.broadcast_to(b_ref[...], (tm, n_pad)).astype(jnp.float32)
        for t, s in enumerate(shifts):
            start = base + s
            if s % 8 == 0:                 # keep slice starts sublane-aligned
                start = pl.multiple_of(start, 8)
            acc = acc + jnp.dot(x_ref[0, pl.ds(start, tm), :], w_ref[t],
                                preferred_element_type=jnp.float32)
        o_ref[0] = acc.astype(o_ref.dtype)

    return kernel


def _fused_conv_head(x_rows, w_taps, b_fused, *, shifts, tm, m_pad, vmem_limit):
    B, Lp, Kc = x_rows.shape
    n_taps, _, n_pad = w_taps.shape
    q_blocks = m_pad // tm

    return pl.pallas_call(
        _make_conv_head_kernel(shifts),
        out_shape=jax.ShapeDtypeStruct((B, m_pad, n_pad), jnp.float32),
        grid_spec=pltpu.PrefetchScalarGridSpec(
            num_scalar_prefetch=0,
            grid=(B, q_blocks),
            in_specs=[
                # Whole folded image for batch b; block index constant along q
                # so it is DMA'd only when b changes.
                # TODO(synk): halo'd row-block tiles + manual make_async_copy
                # double buffering for very large feature maps (v7x 64 MiB VMEM).
                pl.BlockSpec((1, Lp, Kc), lambda b, q: (b, 0, 0)),
                # Grid-invariant fused weights / bias.
                pl.BlockSpec((n_taps, Kc, n_pad), lambda b, q: (0, 0, 0)),
                pl.BlockSpec((1, n_pad), lambda b, q: (0, 0)),
            ],
            out_specs=pl.BlockSpec((1, tm, n_pad), lambda b, q: (b, q, 0)),
        ),
        compiler_params=pltpu.CompilerParams(
            dimension_semantics=("parallel", "parallel"),
            vmem_limit_bytes=int(vmem_limit),
        ),
    )(x_rows, w_taps, b_fused)


# ------------------------------ module logic ------------------------------ #

def _xavier_uniform(key, cout, cin, kh, kw, dtype=jnp.float32):
    # Matches torch.nn.init.xavier_uniform_ for a Conv2d weight (Cout,Cin,kh,kw)
    fan_in = cin * kh * kw
    fan_out = cout * kh * kw
    bound = math.sqrt(6.0 / (fan_in + fan_out))
    return jax.random.uniform(key, (cout, cin, kh, kw), dtype,
                              minval=-bound, maxval=bound)


def init_detection_conv2d_params(key, in_channel, n_boxes, n_classes):
    k_box, k_cls = jax.random.split(key)
    return {
        "w_box": _xavier_uniform(k_box, n_boxes * 4, in_channel, 3, 3),
        "b_box": jnp.zeros((n_boxes * 4,), jnp.float32),
        "w_cls": _xavier_uniform(k_cls, n_boxes * n_classes, in_channel, 3, 3),
        "b_cls": jnp.zeros((n_boxes * n_classes,), jnp.float32),
    }


@functools.partial(jax.jit,
                   static_argnames=("n_boxes", "n_classes", "tm", "compute_dtype"))
def detection_conv2d_forward(params, fmaps, *, n_boxes, n_classes,
                             tm=128, compute_dtype=jnp.float32):
    """fmaps: (B, Cin, H, W) float32 (NCHW, like the PyTorch module)."""
    B, C, H, W = fmaps.shape
    n_box_ch = n_boxes * 4
    n_cls_ch = n_boxes * n_classes
    n_out = n_box_ch + n_cls_ch
    n_pad = _round_up(n_out, 128)            # lane-dense fused output width

    # ---------------- layout prep (cheap XLA glue) ------------------------- #
    x = jnp.transpose(fmaps, (0, 2, 3, 1))                   # NHWC
    xpad = jnp.pad(x, ((0, 0), (1, 1), (1, 1), (0, 0)))      # SAME zero pad
    Hp = H + 2

    fold_kw = C < 128
    if fold_kw:
        # Small Cin: fold (kw, C) into the lane axis, pad to 128 lanes.
        # -> 3 lane-dense matmuls per tile, row stride Wr is 8-aligned.
        Wr = _round_up(W, 8)
        Kc = _round_up(3 * C, 128)
        xf = jnp.concatenate([xpad[:, :, kw:kw + W, :] for kw in range(3)],
                             axis=-1)                         # (B, Hp, W, 3C)
        xf = jnp.pad(xf, ((0, 0), (0, 0), (0, Wr - W), (0, Kc - 3 * C)))
        shifts = (0, Wr, 2 * Wr)
        extra_rows = 2 * Wr

        def to_taps(w):   # (Cout, C, 3, 3) -> (3, 3C, Cout), row = kw*C + c
            return jnp.transpose(w, (2, 3, 1, 0)).reshape(3, 3 * C, -1)
    else:
        # Large Cin (>= MXU K depth): channels already lane-dense, per-tap.
        Wr = _round_up(W + 2, 8)
        Kc = C
        xf = jnp.pad(xpad, ((0, 0), (0, 0), (0, Wr - (W + 2)), (0, 0)))
        shifts = tuple(kh * Wr + kw for kh in range(3) for kw in range(3))
        extra_rows = 2 * Wr + 2

        def to_taps(w):   # (Cout, C, 3, 3) -> (9, C, Cout), tap = kh*3 + kw
            return jnp.transpose(w, (2, 3, 1, 0)).reshape(9, C, -1)

    x_rows = xf.reshape(B, Hp * Wr, Kc)
    M = H * Wr                               # real output rows (no border rows)
    n_taps = len(shifts)

    # Fused per-shift weights / bias: columns = [box || class || zero pad].
    w_taps = jnp.concatenate([to_taps(params["w_box"]),
                              to_taps(params["w_cls"])], axis=-1)
    w_taps = jnp.pad(w_taps, ((0, 0), (0, Kc - w_taps.shape[1]),
                              (0, n_pad - n_out))).astype(compute_dtype)
    b_fused = jnp.concatenate([params["b_box"], params["b_cls"]])
    b_fused = jnp.pad(b_fused, (0, n_pad - n_out)).reshape(1, n_pad)
    b_fused = b_fused.astype(jnp.float32)

    # --------- pick the row tile under a generation-aware VMEM budget ------ #
    phys = _vmem_capacity_bytes()
    vmem_limit = max(32 << 20, min(phys * 3 // 4, phys - (8 << 20)))
    budget = int(vmem_limit * 0.85)

    w_bytes = _tile_footprint((n_taps, Kc, n_pad), compute_dtype)
    b_bytes = _tile_footprint((1, n_pad), jnp.float32)

    def vmem_total(tm_):
        m_pad_ = _cdiv(M, tm_) * tm_
        lp_ = _round_up(m_pad_ + extra_rows, 8)
        img = _tile_footprint((1, lp_, Kc), compute_dtype)
        out = _tile_footprint((1, tm_, n_pad), jnp.float32)
        return 2 * (img + w_bytes + b_bytes + out)   # Pallas double-buffers

    tm_eff = _round_up(max(8, min(tm, _round_up(M, 8))), 8)
    while tm_eff > 8 and vmem_total(tm_eff) > budget:
        tm_eff = max(8, _round_up(tm_eff // 2, 8))
    if vmem_total(tm_eff) > budget:
        # TODO(synk): halo'd row-block input tiling (manual DMA) so very large
        # feature maps fit v7x's 64 MiB VMEM.
        raise ValueError("feature map too large for the whole-image-resident "
                         "VMEM plan of this kernel")

    # Re-fit tm to the actual row count -> at most 7 rounding rows of waste.
    q_blocks = _cdiv(M, tm_eff)
    tm_eff = _round_up(_cdiv(M, q_blocks), 8)
    m_pad = q_blocks * tm_eff
    lp = _round_up(m_pad + extra_rows, 8)

    x_rows = jnp.pad(x_rows, ((0, 0), (0, lp - Hp * Wr), (0, 0)))
    x_rows = x_rows.astype(compute_dtype)

    out_full = _fused_conv_head(x_rows, w_taps, b_fused, shifts=shifts,
                                tm=tm_eff, m_pad=m_pad, vmem_limit=vmem_limit)

    # Drop rounding rows, padded columns and padded lanes; split the two heads.
    out = out_full[:, :H * Wr].reshape(B, H, Wr, n_pad)[:, :, :W, :]
    locs = out[..., :n_box_ch].reshape(B, H * W * n_boxes, 4)
    class_scores = out[..., n_box_ch:n_out].reshape(B, H * W * n_boxes, n_classes)
    return locs, class_scores


# -------------------------------- reference ------------------------------- #

def _reference_forward(params, fmaps, n_boxes, n_classes):
    def conv(x, w, b):
        y = lax.conv_general_dilated(
            x, w, window_strides=(1, 1), padding="SAME",
            dimension_numbers=("NCHW", "OIHW", "NCHW"))
        return y + b[None, :, None, None]

    B = fmaps.shape[0]
    locs = conv(fmaps, params["w_box"], params["b_box"])
    locs = jnp.transpose(locs, (0, 2, 3, 1)).reshape(B, -1, 4)
    cls = conv(fmaps, params["w_cls"], params["b_cls"])
    cls = jnp.transpose(cls, (0, 2, 3, 1)).reshape(B, -1, n_classes)
    return locs, cls


# ---------------------------------- main ----------------------------------- #

if __name__ == "__main__":
    B, Cin, H, W = 2, 4, 16, 16
    n_boxes, n_classes = 4, 6

    key = jax.random.PRNGKey(0)
    k_param, k_input = jax.random.split(key)
    params = init_detection_conv2d_params(k_param, Cin, n_boxes, n_classes)
    fmaps = jax.random.normal(k_input, (B, Cin, H, W), jnp.float32)

    ref_locs, ref_cls = _reference_forward(params, fmaps, n_boxes, n_classes)

    # f32 path: strict correctness check.
    locs, class_scores = detection_conv2d_forward(
        params, fmaps, n_boxes=n_boxes, n_classes=n_classes)
    jax.block_until_ready((locs, class_scores))
    assert locs.shape == (B, H * W * n_boxes, 4)
    assert class_scores.shape == (B, H * W * n_boxes, n_classes)
    assert jnp.allclose(locs, ref_locs, atol=1e-4, rtol=1e-4)
    assert jnp.allclose(class_scores, ref_cls, atol=1e-4, rtol=1e-4)

    # bf16 MXU path: f32 accumulate, relaxed tolerance.
    locs_bf, cls_bf = detection_conv2d_forward(
        params, fmaps, n_boxes=n_boxes, n_classes=n_classes,
        compute_dtype=jnp.bfloat16)
    jax.block_until_ready((locs_bf, cls_bf))
    assert jnp.allclose(locs_bf, ref_locs, atol=5e-2, rtol=5e-2)
    assert jnp.allclose(cls_bf, ref_cls, atol=5e-2, rtol=5e-2)

    print("KERNEL_OK")
</pallas_src>

<mosaic_0001>
module attributes {stable_mosaic.version = 11 : i64} {
  func.func @kernel(%arg0: i32, %arg1: i32, %arg2: memref<1x288x128xf32, #tpu.memory_space<vmem>>, %arg3: memref<3x128x128xf32, #tpu.memory_space<vmem>>, %arg4: memref<1x128xf32, #tpu.memory_space<vmem>>, %arg5: memref<1x128x128xf32, #tpu.memory_space<vmem>>) attributes {dimension_semantics = [#tpu.dimension_semantics<parallel>, #tpu.dimension_semantics<parallel>], iteration_bounds = array<i64: 2, 2>, scalar_prefetch = 0 : i64, scratch_operands = 0 : i64, tpu.core_type = #tpu.core_type<tc>, window_params = [{transform_indices = @transform_0, window_bounds = array<i64: 1, 288, 128>}, {pipeline_mode = #tpu.pipeline_mode<synchronous>, transform_indices = @transform_1, window_bounds = array<i64: 3, 128, 128>}, {pipeline_mode = #tpu.pipeline_mode<synchronous>, transform_indices = @transform_2, window_bounds = array<i64: 1, 128>}, {transform_indices = @transform_3, window_bounds = array<i64: 1, 128, 128>}]} {
    %c128_i32 = arith.constant 128 : i32
    %0 = arith.muli %arg1, %c128_i32 : i32
    %1 = tpu.assume_multiple %0, 8 : i32
    %c0 = arith.constant 0 : index
    %c0_0 = arith.constant 0 : index
    %2 = vector.load %arg4[%c0, %c0_0] : memref<1x128xf32, #tpu.memory_space<vmem>>, vector<1x128xf32>
    %3 = vector.shape_cast %2 : vector<1x128xf32> to vector<1x128xf32>
    %4 = vector.broadcast %3 : vector<1x128xf32> to vector<128x128xf32>
    %c0_i32 = arith.constant 0 : i32
    %5 = arith.addi %1, %c0_i32 : i32
    %6 = tpu.assume_multiple %5, 8 : i32
    %c0_1 = arith.constant 0 : index
    %7 = arith.index_cast %6 : i32 to index
    %c0_2 = arith.constant 0 : index
    %8 = vector.load %arg2[%c0_1, %7, %c0_2] : memref<1x288x128xf32, #tpu.memory_space<vmem>>, vector<1x128x128xf32>
    %9 = vector.shape_cast %8 : vector<1x128x128xf32> to vector<128x128xf32>
    %c0_3 = arith.constant 0 : index
    %c0_4 = arith.constant 0 : index
    %c0_5 = arith.constant 0 : index
    %10 = vector.load %arg3[%c0_3, %c0_4, %c0_5] : memref<3x128x128xf32, #tpu.memory_space<vmem>>, vector<1x128x128xf32>
    %11 = vector.shape_cast %10 : vector<1x128x128xf32> to vector<128x128xf32>
    %cst = arith.constant dense<0.000000e+00> : vector<128x128xf32>
    %12 = tpu.matmul %9, %11, %cst {dimension_numbers = #tpu.dot_dimension_numbers<[1], [0], [0], [1], [0, 0, 1, 1], [], []>} : vector<128x128xf32>, vector<128x128xf32>, vector<128x128xf32> -> vector<128x128xf32>
    %13 = arith.addf %4, %12 : vector<128x128xf32>
    %c16_i32 = arith.constant 16 : i32
    %14 = arith.addi %1, %c16_i32 : i32
    %15 = tpu.assume_multiple %14, 8 : i32
    %c0_6 = arith.constant 0 : index
    %16 = arith.index_cast %15 : i32 to index
    %c0_7 = arith.constant 0 : index
    %17 = vector.load %arg2[%c0_6, %16, %c0_7] : memref<1x288x128xf32, #tpu.memory_space<vmem>>, vector<1x128x128xf32>
    %18 = vector.shape_cast %17 : vector<1x128x128xf32> to vector<128x128xf32>
    %c1 = arith.constant 1 : index
    %c0_8 = arith.constant 0 : index
    %c0_9 = arith.constant 0 : index
    %19 = vector.load %arg3[%c1, %c0_8, %c0_9] : memref<3x128x128xf32, #tpu.memory_space<vmem>>, vector<1x128x128xf32>
    %20 = vector.shape_cast %19 : vector<1x128x128xf32> to vector<128x128xf32>
    %cst_10 = arith.constant dense<0.000000e+00> : vector<128x128xf32>
    %21 = tpu.matmul %18, %20, %cst_10 {dimension_numbers = #tpu.dot_dimension_numbers<[1], [0], [0], [1], [0, 0, 1, 1], [], []>} : vector<128x128xf32>, vector<128x128xf32>, vector<128x128xf32> -> vector<128x128xf32>
    %22 = arith.addf %13, %21 : vector<128x128xf32>
    %c32_i32 = arith.constant 32 : i32
    %23 = arith.addi %1, %c32_i32 : i32
    %24 = tpu.assume_multiple %23, 8 : i32
    %c0_11 = arith.constant 0 : index
    %25 = arith.index_cast %24 : i32 to index
    %c0_12 = arith.constant 0 : index
    %26 = vector.load %arg2[%c0_11, %25, %c0_12] : memref<1x288x128xf32, #tpu.memory_space<vmem>>, vector<1x128x128xf32>
    %27 = vector.shape_cast %26 : vector<1x128x128xf32> to vector<128x128xf32>
    %c2 = arith.constant 2 : index
    %c0_13 = arith.constant 0 : index
    %c0_14 = arith.constant 0 : index
    %28 = vector.load %arg3[%c2, %c0_13, %c0_14] : memref<3x128x128xf32, #tpu.memory_space<vmem>>, vector<1x128x128xf32>
    %29 = vector.shape_cast %28 : vector<1x128x128xf32> to vector<128x128xf32>
    %cst_15 = arith.constant dense<0.000000e+00> : vector<128x128xf32>
    %30 = tpu.matmul %27, %29, %cst_15 {dimension_numbers = #tpu.dot_dimension_numbers<[1], [0], [0], [1], [0, 0, 1, 1], [], []>} : vector<128x128xf32>, vector<128x128xf32>, vector<128x128xf32> -> vector<128x128xf32>
    %31 = arith.addf %22, %30 : vector<128x128xf32>
    %c0_16 = arith.constant 0 : index
    %c0_17 = arith.constant 0 : index
    %c0_18 = arith.constant 0 : index
    %32 = vector.load %arg5[%c0_16, %c0_17, %c0_18] : memref<1x128x128xf32, #tpu.memory_space<vmem>>, vector<1x128x128xf32>
    %33 = vector.shape_cast %32 : vector<1x128x128xf32> to vector<128x128xf32>
    %34 = vector.shape_cast %31 : vector<128x128xf32> to vector<1x128x128xf32>
    tpu.vector_store %arg5[%c0_16, %c0_17, %c0_18], %34 {strides = array<i32>} : memref<1x128x128xf32, #tpu.memory_space<vmem>>, vector<1x128x128xf32>,
    return
  }
  func.func @transform_0(%arg0: i32, %arg1: i32) -> (i32, i32, i32) {
    %c0_i32 = arith.constant 0 : i32
    %c0_i32_0 = arith.constant 0 : i32
    %c0_i32_1 = arith.constant 0 : i32
    return %arg0, %c0_i32, %c0_i32_0 : i32, i32, i32
  }
  func.func @transform_1(%arg0: i32, %arg1: i32) -> (i32, i32, i32) {
    %c0_i32 = arith.constant 0 : i32
    %c0_i32_0 = arith.constant 0 : i32
    %c0_i32_1 = arith.constant 0 : i32
    %c0_i32_2 = arith.constant 0 : i32
    return %c0_i32, %c0_i32_0, %c0_i32_1 : i32, i32, i32
  }
  func.func @transform_2(%arg0: i32, %arg1: i32) -> (i32, i32) {
    %c0_i32 = arith.constant 0 : i32
    %c0_i32_0 = arith.constant 0 : i32
    %c0_i32_1 = arith.constant 0 : i32
    return %c0_i32, %c0_i32_0 : i32, i32
  }
  func.func @transform_3(%arg0: i32, %arg1: i32) -> (i32, i32, i32) {
    %c0_i32 = arith.constant 0 : i32
    %c0_i32_0 = arith.constant 0 : i32
    return %arg0, %arg1, %c0_i32 : i32, i32, i32
  }
}

</mosaic_0001>

<llo_original>
// kernel: detection_conv2d_forward.1
$region0: #{detection_conv2d_forward.1}
  #allocation0 [shape = 'u32[]', space=smem, size = 0x4, offset = 0x4, fixed_abs, tag = 'smem constant byte address 0x4 - core index']
  #allocation1 [shape = 'u32[144,128]{1,0:T(1,128)}', space=vmem, size = 0x12000, scoped, tag = 'internal scratch']
  %s0 = inlined_call_operand.vmem [shape: f32[2,288,128], index: 0, kind: input, shape index: {}]
  %s1 = inlined_call_operand.vmem [shape: f32[3,128,128], index: 1, kind: input, shape index: {}]
  %s2 = inlined_call_operand.vmem [shape: f32[1,128], index: 2, kind: input, shape index: {}]
  %s3 = inlined_call_operand.vmem [shape: f32[2,256,128], index: 3, kind: output, shape index: {}]
  %s4 = sld [smem:[#allocation0]]
  $region45: #{detection_conv2d_forward.1} parent=0
    _
  %s6 = ssub.s32 1, %s4
  %s7 = scalar_select 0, %s6, %s4
  loop: start=0, step=1, limit=6
  $region2: #{detection_conv2d_forward.1} parent=0 // loop_pre_header
    _
  $region3: #{detection_conv2d_forward.1} parent=0 // loop_header
    %s9 = sphi 0, %s13
    %p10 = scmp.ge.s32.totalorder %s9, 6
    %s16 = sphi 0, %s28
    %s17 = sphi 0, %s24
    %s18 = sphi 0, %s16
    %s19 = sphi 0, %s17
    %s20 = sphi 0, %s18
    %s21 = sphi 0, %s19
    %s31 = sphi 0, %s33
    %s34 = sphi 0, %s31
    %s35 = sphi 0, %s34
    %s51 = sphi 0, %s35
    %s55 = sphi 0, %s55
    %s57 = sphi 0, %s55
    %s58 = sphi 0, %s57
    %s72 = sphi 0, %s58
    %s76 = sphi 0, %s76
    %s78 = sphi 0, %s76
    %s79 = sphi 0, %s78
    %s93 = sphi 0, %s79
    %s101 = sphi 0, %s103
    %s104 = sphi 0, %s101
    %s105 = sphi 0, %s104
    %s121 = sphi 0, %s105
  $region4: #{detection_conv2d_forward.1} parent=0 // loop_header_branch
    %12 = sbr.rel (%p10) target = $region8
  $region5: #{detection_conv2d_forward.1} parent=0 // loop_body
    %s14 = ssub.s32 %s9, 1
    %s15 = ssub.s32 %s9, 2
    %s22 = sadd.s32 1, %s17
    %p23 = scmp.ge.s32.totalorder %s22, 2
    %s24 = scalar_select %p23, 0, %s22
    %s25 = sadd.s32 1, %s16
    %s26 = scalar_select %p23, %s25, %s16
    %p27 = scmp.ge.s32.totalorder %s26, 2
    %s28 = scalar_select %p27, 0, %s26
    %s29 = ssub.s32 %s16, %s28
    %p30 = scmp.eq.s32.totalorder %s29, 0
    %s32 = sadd.s32 %s31, 1
    %s33 = scalar_select %p30, %s31, %s32
    %p36 = pneg %p30
    %p37 = scmp.eq.s32.totalorder %s9, 3
    %p38 = por %p36, %p37
    %p39 = scmp.ne.s32.totalorder %s31, %s34
    %p40 = scmp.eq.s32.totalorder %s9, 0
    %p41 = por %p39, %p40
    %p42 = scmp.ne.s32.totalorder %s31, %s34
    %p43 = scmp.eq.s32.totalorder %s14, 3
    %p44 = por %p42, %p43
    %p45 = scmp.ne.s32.totalorder %s34, %s35
    %p46 = scmp.eq.s32.totalorder %s14, 0
    %p47 = por %p45, %p46
    %p48 = scmp.ne.s32.totalorder %s34, %s35
    %p49 = scmp.eq.s32.totalorder %s15, 3
    %p50 = por %p48, %p49
    %p52 = scmp.ne.s32.totalorder %s35, %s51
    %p53 = scmp.eq.s32.totalorder %s15, 0
    %p54 = por %p52, %p53
    %s56 = sadd.s32 %s55, 1
    %p59 = scmp.eq.s32.totalorder %s9, 3
    %p60 = scmp.ne.s32.totalorder %s55, %s57
    %p61 = scmp.eq.s32.totalorder %s9, 0
    %p62 = por %p60, %p61
    %p63 = scmp.ne.s32.totalorder %s55, %s57
    %p64 = scmp.eq.s32.totalorder %s14, 3
    %p65 = por %p63, %p64
    %p66 = scmp.ne.s32.totalorder %s57, %s58
    %p67 = scmp.eq.s32.totalorder %s14, 0
    %p68 = por %p66, %p67
    %p69 = scmp.ne.s32.totalorder %s57, %s58
    %p70 = scmp.eq.s32.totalorder %s15, 3
    %p71 = por %p69, %p70
    %p73 = scmp.ne.s32.totalorder %s58, %s72
    %p74 = scmp.eq.s32.totalorder %s15, 0
    %p75 = por %p73, %p74
    %s77 = sadd.s32 %s76, 1
    %p80 = scmp.eq.s32.totalorder %s9, 3
    %p81 = scmp.ne.s32.totalorder %s76, %s78
    %p82 = scmp.eq.s32.totalorder %s9, 0
    %p83 = por %p81, %p82
    %p84 = scmp.ne.s32.totalorder %s76, %s78
    %p85 = scmp.eq.s32.totalorder %s14, 3
    %p86 = por %p84, %p85
    %p87 = scmp.ne.s32.totalorder %s78, %s79
    %p88 = scmp.eq.s32.totalorder %s14, 0
    %p89 = por %p87, %p88
    %p90 = scmp.ne.s32.totalorder %s78, %s79
    %p91 = scmp.eq.s32.totalorder %s15, 3
    %p92 = por %p90, %p91
    %p94 = scmp.ne.s32.totalorder %s79, %s93
    %p95 = scmp.eq.s32.totalorder %s15, 0
    %p96 = por %p94, %p95
    %s97 = ssub.s32 %s16, %s28
    %s98 = ssub.s32 %s17, %s24
    %s99 = sor.u32 %s97, %s98
    %p100 = scmp.eq.s32.totalorder %s99, 0
    %s102 = sadd.s32 %s101, 1
    %s103 = scalar_select %p100, %s101, %s102
    %p106 = pneg %p100
    %p107 = scmp.eq.s32.totalorder %s9, 3
    %p108 = por %p106, %p107
    %p109 = scmp.ne.s32.totalorder %s101, %s104
    %p110 = scmp.eq.s32.totalorder %s9, 0
    %p111 = por %p109, %p110
    %p112 = scmp.ne.s32.totalorder %s101, %s104
    %p113 = scmp.eq.s32.totalorder %s14, 3
    %p114 = por %p112, %p113
    %p115 = scmp.ne.s32.totalorder %s104, %s105
    %p116 = scmp.eq.s32.totalorder %s14, 0
    %p117 = por %p115, %p116
    %p118 = scmp.ne.s32.totalorder %s104, %s105
    %p119 = scmp.eq.s32.totalorder %s15, 3
    %p120 = por %p118, %p119
    %p122 = scmp.ne.s32.totalorder %s105, %s121
    %p123 = scmp.eq.s32.totalorder %s15, 0
    %p124 = por %p122, %p123
    %p125 = scmp.le.s32.totalorder 1, %s9
    %p126 = scmp.lt.s32.totalorder %s9, 5
    %p127 = pnand %p125, %p126
    %p128 = pneg %p127
    // Predicated region
    $region9: #{detection_conv2d_forward.1} parent=5 // pred_check
      _
    $region10: #{detection_conv2d_forward.1} parent=5 // pred_check_branch
      %130 = sbr.rel (%p127) target = $region12
    $region11: #{detection_conv2d_forward.1} parent=5 // pred_region
      %s131 = ssub.s32 %s9, 1
      // Predicated region
      $region13: #{detection_conv2d_forward.1} parent=11 // pred_check
        %p132 = pneg %p68
      $region14: #{detection_conv2d_forward.1} parent=11 // pred_check_branch
        %134 = sbr.rel (%p132) target = $region16
      $region15: #{detection_conv2d_forward.1} parent=11 // pred_region
        _
      $region16: #{detection_conv2d_forward.1} parent=11 // pred_fallthru
        _
      // Predicated region
      $region17: #{detection_conv2d_forward.1} parent=11 // pred_check
        %p135 = pneg %p89
      $region18: #{detection_conv2d_forward.1} parent=11 // pred_check_branch
        %137 = sbr.rel (%p135) target = $region20
      $region19: #{detection_conv2d_forward.1} parent=11 // pred_region
        _
      $region20: #{detection_conv2d_forward.1} parent=11 // pred_fallthru
        _
    $region12: #{detection_conv2d_forward.1} parent=5 // pred_fallthru
      _
    %p138 = scmp.lt.s32.totalorder %s9, 4
    // Predicated region
    $region21: #{detection_conv2d_forward.1} parent=5 // pred_check
      %p139 = pneg %p138
    $region22: #{detection_conv2d_forward.1} parent=5 // pred_check_branch
      %141 = sbr.rel (%p139) target = $region24
    $region23: #{detection_conv2d_forward.1} parent=5 // pred_region
      // Predicated region
      $region25: #{detection_conv2d_forward.1} parent=23 // pred_check
        %p142 = pneg %p41
      $region26: #{detection_conv2d_forward.1} parent=23 // pred_check_branch
        %144 = sbr.rel (%p142) target = $region28
      $region27: #{detection_conv2d_forward.1} parent=23 // pred_region
        %p145 = scmp.lt.s32.totalorder %s16, 1
        %s146 = scalar_select %p145, %s16, 1
        %s147 = smul.addr %s146, 36
        %s148 = smul.addr %s147, 8
        %s149 = scalar_lea.vmem %s0, %s148
      $region28: #{detection_conv2d_forward.1} parent=23 // pred_fallthru
        _
    $region24: #{detection_conv2d_forward.1} parent=5 // pred_fallthru
      _
    %p150 = scmp.le.s32.totalorder 1, %s9
    %p151 = scmp.lt.s32.totalorder %s9, 5
    %p152 = pnand %p150, %p151
    %p153 = pneg %p152
    // Predicated region
    $region29: #{detection_conv2d_forward.1} parent=5 // pred_check
      _
    $region30: #{detection_conv2d_forward.1} parent=5 // pred_check_branch
      %155 = sbr.rel (%p152) target = $region32
    $region31: #{detection_conv2d_forward.1} parent=5 // pred_region
      %s156 = ssub.s32 %s9, 1
      %p157 = scmp.lt.s32.totalorder %s18, 1
      %s158 = scalar_select %p157, %s18, 1
      %s159 = smul.addr %s158, 36
      %s160 = smul.addr %s159, 8
      %s161 = scalar_lea.vmem %s0, %s160
      %p162 = pneg %p47
      %p163 = pneg %p44
      %p164 = pneg %p68
      %p165 = pneg %p65
      %p166 = pneg %p89
      %p167 = pneg %p86
      %p168 = pneg %p117
      %p169 = pneg %p114
      %s170 = smul.u32 16, %s19
      %p171 = scmp.lt.s32.totalorder %s18, 1
      %s172 = scalar_select %p171, %s18, 1
      %p173 = scmp.lt.s32.totalorder %s170, 31
      %s174 = scalar_select %p173, %s170, 31
      %s175 = smul.addr %s172, 32
      %s176 = sadd.s32 %s174, %s175
      %s177 = smul.addr %s176, 8
      %s178 = scalar_lea.vmem %s3, %s177
      %p179 = scmp.lt.s32.totalorder %s18, 1
      %s180 = scalar_select %p179, %s18, 1
      %s181 = smul.addr %s180, 36
      %s182 = smul.addr %s181, 8
      %s183 = scalar_lea.vmem %s0, %s182
      %s184 = smul.u32 16, %s19
      %p185 = scmp.lt.s32.totalorder %s18, 1
      %s186 = scalar_select %p185, %s18, 1
      %p187 = scmp.lt.s32.totalorder %s184, 31
      %s188 = scalar_select %p187, %s184, 31
      %s189 = smul.addr %s186, 32
      %s190 = sadd.s32 %s188, %s189
      %s191 = smul.addr %s190, 8
      %s192 = scalar_lea.vmem %s3, %s191
      %s193 = smul.u32 16, %s19
      %s194 = smul.u32 %s19, 128
      %v195 = vld [vmem:[%s2] sm:$0x1]
      %v197 = vlaneseq
      %v198 = vshrl.u32 %v197, 7
      %v199 = vsub.s32 0, %v198
      %v200 = vrot.slane %v195, %v199
      %s202 = scalar_lea.vmem %s183, %s194
      %v203 = vld [vmem:[%s202] sm:$0xff]
      %v204 = vld [vmem:[%s202 + $0x8] sm:$0xff]
      %v205 = vld [vmem:[%s202 + $0x10] sm:$0xff]
      %v206 = vld [vmem:[%s202 + $0x18] sm:$0xff]
      %v207 = vld [vmem:[%s202 + $0x20] sm:$0xff]
      %v208 = vld [vmem:[%s202 + $0x28] sm:$0xff]
      %v209 = vld [vmem:[%s202 + $0x30] sm:$0xff]
      %v210 = vld [vmem:[%s202 + $0x38] sm:$0xff]
      %v211 = vld [vmem:[%s202 + $0x40] sm:$0xff]
      %v212 = vld [vmem:[%s202 + $0x48] sm:$0xff]
      %v213 = vld [vmem:[%s202 + $0x50] sm:$0xff]
      %v214 = vld [vmem:[%s202 + $0x58] sm:$0xff]
      %v215 = vld [vmem:[%s202 + $0x60] sm:$0xff]
      %v216 = vld [vmem:[%s202 + $0x68] sm:$0xff]
      %v217 = vld [vmem:[%s202 + $0x70] sm:$0xff]
      %v218 = vld [vmem:[%s202 + $0x78] sm:$0xff]
      %v219 = vld [vmem:[%s1] sm:$0xff]
      %v220 = vld [vmem:[%s1 + $0x8] sm:$0xff]
      %v221 = vld [vmem:[%s1 + $0x10] sm:$0xff]
      %v222 = vld [vmem:[%s1 + $0x18] sm:$0xff]
      %v223 = vld [vmem:[%s1 + $0x20] sm:$0xff]
      %v224 = vld [vmem:[%s1 + $0x28] sm:$0xff]
      %v225 = vld [vmem:[%s1 + $0x30] sm:$0xff]
      %v226 = vld [vmem:[%s1 + $0x38] sm:$0xff]
      %v227 = vld [vmem:[%s1 + $0x40] sm:$0xff]
      %v228 = vld [vmem:[%s1 + $0x48] sm:$0xff]
      %v229 = vld [vmem:[%s1 + $0x50] sm:$0xff]
      %v230 = vld [vmem:[%s1 + $0x58] sm:$0xff]
      %v231 = vld [vmem:[%s1 + $0x60] sm:$0xff]
      %v232 = vld [vmem:[%s1 + $0x68] sm:$0xff]
      %v233 = vld [vmem:[%s1 + $0x70] sm:$0xff]
      %v234 = vld [vmem:[%s1 + $0x78] sm:$0xff]
      %235 = vmatprep.subr.mxu0 0.0
      %236 = vmatpush1.msra.mxu0 %v219
      %237 = vmatprep.subr.mxu0 0.0
      %238 = vmatpush1.msra.mxu0 %v220
      %239 = vmatprep.subr.mxu0 0.0
      %240 = vmatpush1.msra.mxu0 %v221
      %241 = vmatprep.subr.mxu0 0.0
      %242 = vmatpush1.msra.mxu0 %v222
      %243 = vmatprep.subr.mxu0 0.0
      %244 = vmatpush1.msra.mxu0 %v223
      %245 = vmatprep.subr.mxu0 0.0
      %246 = vmatpush1.msra.mxu0 %v224
      %247 = vmatprep.subr.mxu0 0.0
      %248 = vmatpush1.msra.mxu0 %v225
      %249 = vmatprep.subr.mxu0 0.0
      %250 = vmatpush1.msra.mxu0 %v226
      %251 = vmatprep.subr.mxu0 0.0
      %252 = vmatpush1.msra.mxu0 %v227
      %253 = vmatprep.subr.mxu0 0.0
      %254 = vmatpush1.msra.mxu0 %v228
      %255 = vmatprep.subr.mxu0 0.0
      %256 = vmatpush1.msra.mxu0 %v229
      %257 = vmatprep.subr.mxu0 0.0
      %258 = vmatpush1.msra.mxu0 %v230
      %259 = vmatprep.subr.mxu0 0.0
      %260 = vmatpush1.msra.mxu0 %v231
      %261 = vmatprep.subr.mxu0 0.0
      %262 = vmatpush1.msra.mxu0 %v232
      %263 = vmatprep.subr.mxu0 0.0
      %264 = vmatpush1.msra.mxu0 %v233
      %265 = vmatprep.subr.mxu0 0.0
      %266 = vmatpush1.msra.mxu0 %v234
      %267 = vmatprep.subr.mxu0 0.0
      %268 = vmatpush1.msra.mxu0 0.0
      %269 = vmatprep.subr.mxu0 0.0
      %270 = vmatpush1.msra.mxu0 0.0
      %271 = vmatprep.subr.mxu0 0.0
      %272 = vmatpush1.msra.mxu0 0.0
      %273 = vmatprep.subr.mxu0 0.0
      %274 = vmatpush1.msra.mxu0 0.0
      %275 = vmatprep.subr.mxu0 0.0
      %276 = vmatpush1.msra.mxu0 0.0
      %277 = vmatprep.subr.mxu0 0.0
      %278 = vmatpush1.msra.mxu0 0.0
      %279 = vmatprep.subr.mxu0 0.0
      %280 = vmatpush1.msra.mxu0 0.0
      %281 = vmatprep.subr.mxu0 0.0
      %282 = vmatpush1.msra.mxu0 0.0
      %283 = vmatprep.subr.mxu0 0.0
      %284 = vmatpush1.msra.mxu0 0.0
      %285 = vmatprep.subr.mxu0 0.0
      %286 = vmatpush1.msra.mxu0 0.0
      %287 = vmatprep.subr.mxu0 0.0
      %288 = vmatpush1.msra.mxu0 0.0
      %289 = vmatprep.subr.mxu0 0.0
      %290 = vmatpush1.msra.mxu0 0.0
      %291 = vmatprep.subr.mxu0 0.0
      %292 = vmatpush1.msra.mxu0 0.0
      %293 = vmatprep.subr.mxu0 0.0
      %294 = vmatpush1.msra.mxu0 0.0
      %295 = vmatprep.subr.mxu0 0.0
      %296 = vmatpush1.msra.mxu0 0.0
      %297 = vmatprep.subr.mxu0 0.0
      %298 = vmatpush1.msra.mxu0 0.0
      %299 = vmatprep.mubr.f32.mxu0 0.0
      %300 = vmatmul.mubr.f32.gmra.mrb[0].mxu0 %v203
      %v301 = vpop.f32.mrb[0].mxu0
      %v302 = vadd.f32 0.0, %v301
      %v303 = vpop.f32.mrb[0].mxu0
      %304 = vmatprep.mubr.f32.mxu0 0.0
      %305 = vmatmul.mubr.f32.gmra.mrb[0].mxu0 %v204
      %v306 = vpop.f32.mrb[0].mxu0
      %v307 = vadd.f32 0.0, %v306
      %v308 = vpop.f32.mrb[0].mxu0
      %309 = vmatprep.mubr.f32.mxu0 0.0
      %310 = vmatmul.mubr.f32.gmra.mrb[0].mxu0 %v205
      %v311 = vpop.f32.mrb[0].mxu0
      %v312 = vadd.f32 0.0, %v311
      %v313 = vpop.f32.mrb[0].mxu0
      %314 = vmatprep.mubr.f32.mxu0 0.0
      %315 = vmatmul.mubr.f32.gmra.mrb[0].mxu0 %v206
      %v316 = vpop.f32.mrb[0].mxu0
      %v317 = vadd.f32 0.0, %v316
      %v318 = vpop.f32.mrb[0].mxu0
      %319 = vmatprep.mubr.f32.mxu0 0.0
      %320 = vmatmul.mubr.f32.gmra.mrb[0].mxu0 %v207
      %v321 = vpop.f32.mrb[0].mxu0
      %v322 = vadd.f32 0.0, %v321
      %v323 = vpop.f32.mrb[0].mxu0
      %324 = vmatprep.mubr.f32.mxu0 0.0
      %325 = vmatmul.mubr.f32.gmra.mrb[0].mxu0 %v208
      %v326 = vpop.f32.mrb[0].mxu0
      %v327 = vadd.f32 0.0, %v326
      %v328 = vpop.f32.mrb[0].mxu0
      %329 = vmatprep.mubr.f32.mxu0 0.0
      %330 = vmatmul.mubr.f32.gmra.mrb[0].mxu0 %v209
      %v331 = vpop.f32.mrb[0].mxu0
      %v332 = vadd.f32 0.0, %v331
      %v333 = vpop.f32.mrb[0].mxu0
      %334 = vmatprep.mubr.f32.mxu0 0.0
      %335 = vmatmul.mubr.f32.gmra.mrb[0].mxu0 %v210
      %v336 = vpop.f32.mrb[0].mxu0
      %v337 = vadd.f32 0.0, %v336
      %v338 = vpop.f32.mrb[0].mxu0
      %339 = vmatprep.mubr.f32.mxu0 0.0
      %340 = vmatmul.mubr.f32.gmra.mrb[0].mxu0 %v211
      %v341 = vpop.f32.mrb[0].mxu0
      %v342 = vadd.f32 0.0, %v341
      %v343 = vpop.f32.mrb[0].mxu0
      %344 = vmatprep.mubr.f32.mxu0 0.0
      %345 = vmatmul.mubr.f32.gmra.mrb[0].mxu0 %v212
      %v346 = vpop.f32.mrb[0].mxu0
      %v347 = vadd.f32 0.0, %v346
      %v348 = vpop.f32.mrb[0].mxu0
      %349 = vmatprep.mubr.f32.mxu0 0.0
      %350 = vmatmul.mubr.f32.gmra.mrb[0].mxu0 %v213
      %v351 = vpop.f32.mrb[0].mxu0
      %v352 = vadd.f32 0.0, %v351
      %v353 = vpop.f32.mrb[0].mxu0
      %354 = vmatprep.mubr.f32.mxu0 0.0
      %355 = vmatmul.mubr.f32.gmra.mrb[0].mxu0 %v214
      %v356 = vpop.f32.mrb[0].mxu0
      %v357 = vadd.f32 0.0, %v356
      %v358 = vpop.f32.mrb[0].mxu0
      %359 = vmatprep.mubr.f32.mxu0 0.0
      %360 = vmatmul.mubr.f32.gmra.mrb[0].mxu0 %v215
      %v361 = vpop.f32.mrb[0].mxu0
      %v362 = vadd.f32 0.0, %v361
      %v363 = vpop.f32.mrb[0].mxu0
      %364 = vmatprep.mubr.f32.mxu0 0.0
      %365 = vmatmul.mubr.f32.gmra.mrb[0].mxu0 %v216
      %v366 = vpop.f32.mrb[0].mxu0
      %v367 = vadd.f32 0.0, %v366
      %v368 = vpop.f32.mrb[0].mxu0
      %369 = vmatprep.mubr.f32.mxu0 0.0
      %370 = vmatmul.mubr.f32.gmra.mrb[0].mxu0 %v217
      %v371 = vpop.f32.mrb[0].mxu0
      %v372 = vadd.f32 0.0, %v371
      %v373 = vpop.f32.mrb[0].mxu0
      %374 = vmatprep.mubr.f32.mxu0 0.0
      %375 = vmatmul.mubr.f32.gmra.mrb[0].mxu0 %v218
      %v376 = vpop.f32.mrb[0].mxu0
      %v377 = vadd.f32 0.0, %v376
      %v378 = vpop.f32.mrb[0].mxu0
      %379 = vdwg.mxu0
      %v380 = vadd.f32 %v200, %v302
      %v381 = vadd.f32 %v200, %v307
      %v382 = vadd.f32 %v200, %v312
      %v383 = vadd.f32 %v200, %v317
      %v384 = vadd.f32 %v200, %v322
      %v385 = vadd.f32 %v200, %v327
      %v386 = vadd.f32 %v200, %v332
      %v387 = vadd.f32 %v200, %v337
      %v388 = vadd.f32 %v200, %v342
      %v389 = vadd.f32 %v200, %v347
      %v390 = vadd.f32 %v200, %v352
      %v391 = vadd.f32 %v200, %v357
      %v392 = vadd.f32 %v200, %v362
      %v393 = vadd.f32 %v200, %v367
      %v394 = vadd.f32 %v200, %v372
      %v395 = vadd.f32 %v200, %v377
      %s396 = sadd.s32 %s194, 16
      %s397 = scalar_lea.vmem %s183, %s396
      %v398 = vld [vmem:[%s397] sm:$0xff]
      %v399 = vld [vmem:[%s397 + $0x8] sm:$0xff]
      %v400 = vld [vmem:[%s397 + $0x10] sm:$0xff]
      %v401 = vld [vmem:[%s397 + $0x18] sm:$0xff]
      %v402 = vld [vmem:[%s397 + $0x20] sm:$0xff]
      %v403 = vld [vmem:[%s397 + $0x28] sm:$0xff]
      %v404 = vld [vmem:[%s397 + $0x30] sm:$0xff]
      %v405 = vld [vmem:[%s397 + $0x38] sm:$0xff]
      %v406 = vld [vmem:[%s397 + $0x40] sm:$0xff]
      %v407 = vld [vmem:[%s397 + $0x48] sm:$0xff]
      %v408 = vld [vmem:[%s397 + $0x50] sm:$0xff]
      %v409 = vld [vmem:[%s397 + $0x58] sm:$0xff]
      %v410 = vld [vmem:[%s397 + $0x60] sm:$0xff]
      %v411 = vld [vmem:[%s397 + $0x68] sm:$0xff]
      %v412 = vld [vmem:[%s397 + $0x70] sm:$0xff]
      %v413 = vld [vmem:[%s397 + $0x78] sm:$0xff]
      %s414 = scalar_lea.vmem %s1, 128
      %v415 = vld [vmem:[%s414] sm:$0xff]
      %v416 = vld [vmem:[%s414 + $0x8] sm:$0xff]
      %v417 = vld [vmem:[%s414 + $0x10] sm:$0xff]
      %v418 = vld [vmem:[%s414 + $0x18] sm:$0xff]
      %v419 = vld [vmem:[%s414 + $0x20] sm:$0xff]
      %v420 = vld [vmem:[%s414 + $0x28] sm:$0xff]
      %v421 = vld [vmem:[%s414 + $0x30] sm:$0xff]
      %v422 = vld [vmem:[%s414 + $0x38] sm:$0xff]
      %v423 = vld [vmem:[%s414 + $0x40] sm:$0xff]
      %v424 = vld [vmem:[%s414 + $0x48] sm:$0xff]
      %v425 = vld [vmem:[%s414 + $0x50] sm:$0xff]
      %v426 = vld [vmem:[%s414 + $0x58] sm:$0xff]
      %v427 = vld [vmem:[%s414 + $0x60] sm:$0xff]
      %v428 = vld [vmem:[%s414 + $0x68] sm:$0xff]
      %v429 = vld [vmem:[%s414 + $0x70] sm:$0xff]
      %v430 = vld [vmem:[%s414 + $0x78] sm:$0xff]
      %431 = vmatprep.subr.mxu0 0.0
      %432 = vmatpush1.msra.mxu0 %v415
      %433 = vmatprep.subr.mxu0 0.0
      %434 = vmatpush1.msra.mxu0 %v416
      %435 = vmatprep.subr.mxu0 0.0
      %436 = vmatpush1.msra.mxu0 %v417
      %437 = vmatprep.subr.mxu0 0.0
      %438 = vmatpush1.msra.mxu0 %v418
      %439 = vmatprep.subr.mxu0 0.0
      %440 = vmatpush1.msra.mxu0 %v419
      %441 = vmatprep.subr.mxu0 0.0
      %442 = vmatpush1.msra.mxu0 %v420
      %443 = vmatprep.subr.mxu0 0.0
      %444 = vmatpush1.msra.mxu0 %v421
      %445 = vmatprep.subr.mxu0 0.0
      %446 = vmatpush1.msra.mxu0 %v422
      %447 = vmatprep.subr.mxu0 0.0
      %448 = vmatpush1.msra.mxu0 %v423
      %449 = vmatprep.subr.mxu0 0.0
      %450 = vmatpush1.msra.mxu0 %v424
      %451 = vmatprep.subr.mxu0 0.0
      %452 = vmatpush1.msra.mxu0 %v425
      %453 = vmatprep.subr.mxu0 0.0
      %454 = vmatpush1.msra.mxu0 %v426
      %455 = vmatprep.subr.mxu0 0.0
      %456 = vmatpush1.msra.mxu0 %v427
      %457 = vmatprep.subr.mxu0 0.0
      %458 = vmatpush1.msra.mxu0 %v428
      %459 = vmatprep.subr.mxu0 0.0
      %460 = vmatpush1.msra.mxu0 %v429
      %461 = vmatprep.subr.mxu0 0.0
      %462 = vmatpush1.msra.mxu0 %v430
      %463 = vmatprep.subr.mxu0 0.0
      %464 = vmatpush1.msra.mxu0 0.0
      %465 = vmatprep.subr.mxu0 0.0
      %466 = vmatpush1.msra.mxu0 0.0
      %467 = vmatprep.subr.mxu0 0.0
      %468 = vmatpush1.msra.mxu0 0.0
      %469 = vmatprep.subr.mxu0 0.0
      %470 = vmatpush1.msra.mxu0 0.0
      %471 = vmatprep.subr.mxu0 0.0
      %472 = vmatpush1.msra.mxu0 0.0
      %473 = vmatprep.subr.mxu0 0.0
      %474 = vmatpush1.msra.mxu0 0.0
      %475 = vmatprep.subr.mxu0 0.0
      %476 = vmatpush1.msra.mxu0 0.0
      %477 = vmatprep.subr.mxu0 0.0
      %478 = vmatpush1.msra.mxu0 0.0
      %479 = vmatprep.subr.mxu0 0.0
      %480 = vmatpush1.msra.mxu0 0.0
      %481 = vmatprep.subr.mxu0 0.0
      %482 = vmatpush1.msra.mxu0 0.0
      %483 = vmatprep.subr.mxu0 0.0
      %484 = vmatpush1.msra.mxu0 0.0
      %485 = vmatprep.subr.mxu0 0.0
      %486 = vmatpush1.msra.mxu0 0.0
      %487 = vmatprep.subr.mxu0 0.0
      %488 = vmatpush1.msra.mxu0 0.0
      %489 = vmatprep.subr.mxu0 0.0
      %490 = vmatpush1.msra.mxu0 0.0
      %491 = vmatprep.subr.mxu0 0.0
      %492 = vmatpush1.msra.mxu0 0.0
      %493 = vmatprep.subr.mxu0 0.0
      %494 = vmatpush1.msra.mxu0 0.0
      %495 = vmatprep.mubr.f32.mxu0 0.0
      %496 = vmatmul.mubr.f32.gmra.mrb[0].mxu0 %v398
      %v497 = vpop.f32.mrb[0].mxu0
      %v498 = vadd.f32 0.0, %v497
      %v499 = vpop.f32.mrb[0].mxu0
      %500 = vmatprep.mubr.f32.mxu0 0.0
      %501 = vmatmul.mubr.f32.gmra.mrb[0].mxu0 %v399
      %v502 = vpop.f32.mrb[0].mxu0
      %v503 = vadd.f32 0.0, %v502
      %v504 = vpop.f32.mrb[0].mxu0
      %505 = vmatprep.mubr.f32.mxu0 0.0
      %506 = vmatmul.mubr.f32.gmra.mrb[0].mxu0 %v400
      %v507 = vpop.f32.mrb[0].mxu0
      %v508 = vadd.f32 0.0, %v507
      %v509 = vpop.f32.mrb[0].mxu0
      %510 = vmatprep.mubr.f32.mxu0 0.0
      %511 = vmatmul.mubr.f32.gmra.mrb[0].mxu0 %v401
      %v512 = vpop.f32.mrb[0].mxu0
      %v513 = vadd.f32 0.0, %v512
      %v514 = vpop.f32.mrb[0].mxu0
      %515 = vmatprep.mubr.f32.mxu0 0.0
      %516 = vmatmul.mubr.f32.gmra.mrb[0].mxu0 %v402
      %v517 = vpop.f32.mrb[0].mxu0
      %v518 = vadd.f32 0.0, %v517
      %v519 = vpop.f32.mrb[0].mxu0
      %520 = vmatprep.mubr.f32.mxu0 0.0
      %521 = vmatmul.mubr.f32.gmra.mrb[0].mxu0 %v403
      %v522 = vpop.f32.mrb[0].mxu0
      %v523 = vadd.f32 0.0, %v522
      %v524 = vpop.f32.mrb[0].mxu0
      %525 = vmatprep.mubr.f32.mxu0 0.0
      %526 = vmatmul.mubr.f32.gmra.mrb[0].mxu0 %v404
      %v527 = vpop.f32.mrb[0].mxu0
      %v528 = vadd.f32 0.0, %v527
      %v529 = vpop.f32.mrb[0].mxu0
      %530 = vmatprep.mubr.f32.mxu0 0.0
      %531 = vmatmul.mubr.f32.gmra.mrb[0].mxu0 %v405
      %v532 = vpop.f32.mrb[0].mxu0
      %v533 = vadd.f32 0.0, %v532
      %v534 = vpop.f32.mrb[0].mxu0
      %535 = vmatprep.mubr.f32.mxu0 0.0
      %536 = vmatmul.mubr.f32.gmra.mrb[0].mxu0 %v406
      %v537 = vpop.f32.mrb[0].mxu0
      %v538 = vadd.f32 0.0, %v537
      %v539 = vpop.f32.mrb[0].mxu0
      %540 = vmatprep.mubr.f32.mxu0 0.0
      %541 = vmatmul.mubr.f32.gmra.mrb[0].mxu0 %v407
      %v542 = vpop.f32.mrb[0].mxu0
      %v543 = vadd.f32 0.0, %v542
      %v544 = vpop.f32.mrb[0].mxu0
      %545 = vmatprep.mubr.f32.mxu0 0.0
      %546 = vmatmul.mubr.f32.gmra.mrb[0].mxu0 %v408
      %v547 = vpop.f32.mrb[0].mxu0
      %v548 = vadd.f32 0.0, %v547
      %v549 = vpop.f32.mrb[0].mxu0
      %550 = vmatprep.mubr.f32.mxu0 0.0
      %551 = vmatmul.mubr.f32.gmra.mrb[0].mxu0 %v409
      %v552 = vpop.f32.mrb[0].mxu0
      %v553 = vadd.f32 0.0, %v552
      %v554 = vpop.f32.mrb[0].mxu0
      %555 = vmatprep.mubr.f32.mxu0 0.0
      %556 = vmatmul.mubr.f32.gmra.mrb[0].mxu0 %v410
      %v557 = vpop.f32.mrb[0].mxu0
      %v558 = vadd.f32 0.0, %v557
      %v559 = vpop.f32.mrb[0].mxu0
      %560 = vmatprep.mubr.f32.mxu0 0.0
      %561 = vmatmul.mubr.f32.gmra.mrb[0].mxu0 %v411
      %v562 = vpop.f32.mrb[0].mxu0
      %v563 = vadd.f32 0.0, %v562
      %v564 = vpop.f32.mrb[0].mxu0
      %565 = vmatprep.mubr.f32.mxu0 0.0
      %566 = vmatmul.mubr.f32.gmra.mrb[0].mxu0 %v412
      %v567 = vpop.f32.mrb[0].mxu0
      %v568 = vadd.f32 0.0, %v567
      %v569 = vpop.f32.mrb[0].mxu0
      %570 = vmatprep.mubr.f32.mxu0 0.0
      %571 = vmatmul.mubr.f32.gmra.mrb[0].mxu0 %v413
      %v572 = vpop.f32.mrb[0].mxu0
      %v573 = vadd.f32 0.0, %v572
      %v574 = vpop.f32.mrb[0].mxu0
      %575 = vdwg.mxu0
      %v576 = vadd.f32 %v380, %v498
      %v577 = vadd.f32 %v381, %v503
      %v578 = vadd.f32 %v382, %v508
      %v579 = vadd.f32 %v383, %v513
      %v580 = vadd.f32 %v384, %v518
      %v581 = vadd.f32 %v385, %v523
      %v582 = vadd.f32 %v386, %v528
      %v583 = vadd.f32 %v387, %v533
      %v584 = vadd.f32 %v388, %v538
      %v585 = vadd.f32 %v389, %v543
      %v586 = vadd.f32 %v390, %v548
      %v587 = vadd.f32 %v391, %v553
      %v588 = vadd.f32 %v392, %v558
      %v589 = vadd.f32 %v393, %v563
      %v590 = vadd.f32 %v394, %v568
      %v591 = vadd.f32 %v395, %v573
      %s592 = sadd.s32 %s194, 32
      %s593 = scalar_lea.vmem %s183, %s592
      %v594 = vld [vmem:[%s593] sm:$0xff]
      %v595 = vld [vmem:[%s593 + $0x8] sm:$0xff]
      %v596 = vld [vmem:[%s593 + $0x10] sm:$0xff]
      %v597 = vld [vmem:[%s593 + $0x18] sm:$0xff]
      %v598 = vld [vmem:[%s593 + $0x20] sm:$0xff]
      %v599 = vld [vmem:[%s593 + $0x28] sm:$0xff]
      %v600 = vld [vmem:[%s593 + $0x30] sm:$0xff]
      %v601 = vld [vmem:[%s593 + $0x38] sm:$0xff]
      %v602 = vld [vmem:[%s593 + $0x40] sm:$0xff]
      %v603 = vld [vmem:[%s593 + $0x48] sm:$0xff]
      %v604 = vld [vmem:[%s593 + $0x50] sm:$0xff]
      %v605 = vld [vmem:[%s593 + $0x58] sm:$0xff]
      %v606 = vld [vmem:[%s593 + $0x60] sm:$0xff]
      %v607 = vld [vmem:[%s593 + $0x68] sm:$0xff]
      %v608 = vld [vmem:[%s593 + $0x70] sm:$0xff]
      %v609 = vld [vmem:[%s593 + $0x78] sm:$0xff]
      %s610 = scalar_lea.vmem %s1, 256
      %v611 = vld [vmem:[%s610] sm:$0xff]
      %v612 = vld [vmem:[%s610 + $0x8] sm:$0xff]
      %v613 = vld [vmem:[%s610 + $0x10] sm:$0xff]
      %v614 = vld [vmem:[%s610 + $0x18] sm:$0xff]
      %v615 = vld [vmem:[%s610 + $0x20] sm:$0xff]
      %v616 = vld [vmem:[%s610 + $0x28] sm:$0xff]
      %v617 = vld [vmem:[%s610 + $0x30] sm:$0xff]
      %v618 = vld [vmem:[%s610 + $0x38] sm:$0xff]
      %v619 = vld [vmem:[%s610 + $0x40] sm:$0xff]
      %v620 = vld [vmem:[%s610 + $0x48] sm:$0xff]
      %v621 = vld [vmem:[%s610 + $0x50] sm:$0xff]
      %v622 = vld [vmem:[%s610 + $0x58] sm:$0xff]
      %v623 = vld [vmem:[%s610 + $0x60] sm:$0xff]
      %v624 = vld [vmem:[%s610 + $0x68] sm:$0xff]
      %v625 = vld [vmem:[%s610 + $0x70] sm:$0xff]
      %v626 = vld [vmem:[%s610 + $0x78] sm:$0xff]
      %627 = vmatprep.subr.mxu0 0.0
      %628 = vmatpush1.msra.mxu0 %v611
      %629 = vmatprep.subr.mxu0 0.0
      %630 = vmatpush1.msra.mxu0 %v612
      %631 = vmatprep.subr.mxu0 0.0
      %632 = vmatpush1.msra.mxu0 %v613
      %633 = vmatprep.subr.mxu0 0.0
      %634 = vmatpush1.msra.mxu0 %v614
      %635 = vmatprep.subr.mxu0 0.0
      %636 = vmatpush1.msra.mxu0 %v615
      %637 = vmatprep.subr.mxu0 0.0
      %638 = vmatpush1.msra.mxu0 %v616
      %639 = vmatprep.subr.mxu0 0.0
      %640 = vmatpush1.msra.mxu0 %v617
      %641 = vmatprep.subr.mxu0 0.0
      %642 = vmatpush1.msra.mxu0 %v618
      %643 = vmatprep.subr.mxu0 0.0
      %644 = vmatpush1.msra.mxu0 %v619
      %645 = vmatprep.subr.mxu0 0.0
      %646 = vmatpush1.msra.mxu0 %v620
      %647 = vmatprep.subr.mxu0 0.0
      %648 = vmatpush1.msra.mxu0 %v621
      %649 = vmatprep.subr.mxu0 0.0
      %650 = vmatpush1.msra.mxu0 %v622
      %651 = vmatprep.subr.mxu0 0.0
      %652 = vmatpush1.msra.mxu0 %v623
      %653 = vmatprep.subr.mxu0 0.0
      %654 = vmatpush1.msra.mxu0 %v624
      %655 = vmatprep.subr.mxu0 0.0
      %656 = vmatpush1.msra.mxu0 %v625
      %657 = vmatprep.subr.mxu0 0.0
      %658 = vmatpush1.msra.mxu0 %v626
      %659 = vmatprep.subr.mxu0 0.0
      %660 = vmatpush1.msra.mxu0 0.0
      %661 = vmatprep.subr.mxu0 0.0
      %662 = vmatpush1.msra.mxu0 0.0
      %663 = vmatprep.subr.mxu0 0.0
      %664 = vmatpush1.msra.mxu0 0.0
      %665 = vmatprep.subr.mxu0 0.0
      %666 = vmatpush1.msra.mxu0 0.0
      %667 = vmatprep.subr.mxu0 0.0
      %668 = vmatpush1.msra.mxu0 0.0
      %669 = vmatprep.subr.mxu0 0.0
      %670 = vmatpush1.msra.mxu0 0.0
      %671 = vmatprep.subr.mxu0 0.0
      %672 = vmatpush1.msra.mxu0 0.0
      %673 = vmatprep.subr.mxu0 0.0
      %674 = vmatpush1.msra.mxu0 0.0
      %675 = vmatprep.subr.mxu0 0.0
      %676 = vmatpush1.msra.mxu0 0.0
      %677 = vmatprep.subr.mxu0 0.0
      %678 = vmatpush1.msra.mxu0 0.0
      %679 = vmatprep.subr.mxu0 0.0
      %680 = vmatpush1.msra.mxu0 0.0
      %681 = vmatprep.subr.mxu0 0.0
      %682 = vmatpush1.msra.mxu0 0.0
      %683 = vmatprep.subr.mxu0 0.0
      %684 = vmatpush1.msra.mxu0 0.0
      %685 = vmatprep.subr.mxu0 0.0
      %686 = vmatpush1.msra.mxu0 0.0
      %687 = vmatprep.subr.mxu0 0.0
      %688 = vmatpush1.msra.mxu0 0.0
      %689 = vmatprep.subr.mxu0 0.0
      %690 = vmatpush1.msra.mxu0 0.0
      %691 = vmatprep.mubr.f32.mxu0 0.0
      %692 = vmatmul.mubr.f32.gmra.mrb[0].mxu0 %v594
      %v693 = vpop.f32.mrb[0].mxu0
      %v694 = vadd.f32 0.0, %v693
      %v695 = vpop.f32.mrb[0].mxu0
      %696 = vmatprep.mubr.f32.mxu0 0.0
      %697 = vmatmul.mubr.f32.gmra.mrb[0].mxu0 %v595
      %v698 = vpop.f32.mrb[0].mxu0
      %v699 = vadd.f32 0.0, %v698
      %v700 = vpop.f32.mrb[0].mxu0
      %701 = vmatprep.mubr.f32.mxu0 0.0
      %702 = vmatmul.mubr.f32.gmra.mrb[0].mxu0 %v596
      %v703 = vpop.f32.mrb[0].mxu0
      %v704 = vadd.f32 0.0, %v703
      %v705 = vpop.f32.mrb[0].mxu0
      %706 = vmatprep.mubr.f32.mxu0 0.0
      %707 = vmatmul.mubr.f32.gmra.mrb[0].mxu0 %v597
      %v708 = vpop.f32.mrb[0].mxu0
      %v709 = vadd.f32 0.0, %v708
      %v710 = vpop.f32.mrb[0].mxu0
      %711 = vmatprep.mubr.f32.mxu0 0.0
      %712 = vmatmul.mubr.f32.gmra.mrb[0].mxu0 %v598
      %v713 = vpop.f32.mrb[0].mxu0
      %v714 = vadd.f32 0.0, %v713
      %v715 = vpop.f32.mrb[0].mxu0
      %716 = vmatprep.mubr.f32.mxu0 0.0
      %717 = vmatmul.mubr.f32.gmra.mrb[0].mxu0 %v599
      %v718 = vpop.f32.mrb[0].mxu0
      %v719 = vadd.f32 0.0, %v718
      %v720 = vpop.f32.mrb[0].mxu0
      %721 = vmatprep.mubr.f32.mxu0 0.0
      %722 = vmatmul.mubr.f32.gmra.mrb[0].mxu0 %v600
      %v723 = vpop.f32.mrb[0].mxu0
      %v724 = vadd.f32 0.0, %v723
      %v725 = vpop.f32.mrb[0].mxu0
      %726 = vmatprep.mubr.f32.mxu0 0.0
      %727 = vmatmul.mubr.f32.gmra.mrb[0].mxu0 %v601
      %v728 = vpop.f32.mrb[0].mxu0
      %v729 = vadd.f32 0.0, %v728
      %v730 = vpop.f32.mrb[0].mxu0
      %731 = vmatprep.mubr.f32.mxu0 0.0
      %732 = vmatmul.mubr.f32.gmra.mrb[0].mxu0 %v602
      %v733 = vpop.f32.mrb[0].mxu0
      %v734 = vadd.f32 0.0, %v733
      %v735 = vpop.f32.mrb[0].mxu0
      %736 = vmatprep.mubr.f32.mxu0 0.0
      %737 = vmatmul.mubr.f32.gmra.mrb[0].mxu0 %v603
      %v738 = vpop.f32.mrb[0].mxu0
      %v739 = vadd.f32 0.0, %v738
      %v740 = vpop.f32.mrb[0].mxu0
      %741 = vmatprep.mubr.f32.mxu0 0.0
      %742 = vmatmul.mubr.f32.gmra.mrb[0].mxu0 %v604
      %v743 = vpop.f32.mrb[0].mxu0
      %v744 = vadd.f32 0.0, %v743
      %v745 = vpop.f32.mrb[0].mxu0
      %746 = vmatprep.mubr.f32.mxu0 0.0
      %747 = vmatmul.mubr.f32.gmra.mrb[0].mxu0 %v605
      %v748 = vpop.f32.mrb[0].mxu0
      %v749 = vadd.f32 0.0, %v748
      %v750 = vpop.f32.mrb[0].mxu0
      %751 = vmatprep.mubr.f32.mxu0 0.0
      %752 = vmatmul.mubr.f32.gmra.mrb[0].mxu0 %v606
      %v753 = vpop.f32.mrb[0].mxu0
      %v754 = vadd.f32 0.0, %v753
      %v755 = vpop.f32.mrb[0].mxu0
      %756 = vmatprep.mubr.f32.mxu0 0.0
      %757 = vmatmul.mubr.f32.gmra.mrb[0].mxu0 %v607
      %v758 = vpop.f32.mrb[0].mxu0
      %v759 = vadd.f32 0.0, %v758
      %v760 = vpop.f32.mrb[0].mxu0
      %761 = vmatprep.mubr.f32.mxu0 0.0
      %762 = vmatmul.mubr.f32.gmra.mrb[0].mxu0 %v608
      %v763 = vpop.f32.mrb[0].mxu0
      %v764 = vadd.f32 0.0, %v763
      %v765 = vpop.f32.mrb[0].mxu0
      %766 = vmatprep.mubr.f32.mxu0 0.0
      %767 = vmatmul.mubr.f32.gmra.mrb[0].mxu0 %v609
      %v768 = vpop.f32.mrb[0].mxu0
      %v769 = vadd.f32 0.0, %v768
      %v770 = vpop.f32.mrb[0].mxu0
      %771 = vdwg.mxu0
      %v772 = vadd.f32 %v576, %v694
      %v773 = vadd.f32 %v577, %v699
      %v774 = vadd.f32 %v578, %v704
      %v775 = vadd.f32 %v579, %v709
      %v776 = vadd.f32 %v580, %v714
      %v777 = vadd.f32 %v581, %v719
      %v778 = vadd.f32 %v582, %v724
      %v779 = vadd.f32 %v583, %v729
      %v780 = vadd.f32 %v584, %v734
      %v781 = vadd.f32 %v585, %v739
      %v782 = vadd.f32 %v586, %v744
      %v783 = vadd.f32 %v587, %v749
      %v784 = vadd.f32 %v588, %v754
      %v785 = vadd.f32 %v589, %v759
      %v786 = vadd.f32 %v590, %v764
      %v787 = vadd.f32 %v591, %v769
      %788 = vst [vmem:[%s192] sm:$0xff] %v772
      %789 = vst [vmem:[%s192 + $0x8] sm:$0xff] %v773
      %790 = vst [vmem:[%s192 + $0x10] sm:$0xff] %v774
      %791 = vst [vmem:[%s192 + $0x18] sm:$0xff] %v775
      %792 = vst [vmem:[%s192 + $0x20] sm:$0xff] %v776
      %793 = vst [vmem:[%s192 + $0x28] sm:$0xff] %v777
      %794 = vst [vmem:[%s192 + $0x30] sm:$0xff] %v778
      %795 = vst [vmem:[%s192 + $0x38] sm:$0xff] %v779
      %796 = vst [vmem:[%s192 + $0x40] sm:$0xff] %v780
      %797 = vst [vmem:[%s192 + $0x48] sm:$0xff] %v781
      %798 = vst [vmem:[%s192 + $0x50] sm:$0xff] %v782
      %799 = vst [vmem:[%s192 + $0x58] sm:$0xff] %v783
      %800 = vst [vmem:[%s192 + $0x60] sm:$0xff] %v784
      %801 = vst [vmem:[%s192 + $0x68] sm:$0xff] %v785
      %802 = vst [vmem:[%s192 + $0x70] sm:$0xff] %v786
      %803 = vst [vmem:[%s192 + $0x78] sm:$0xff] %v787
      %s804 = smul.u32 16, %s19
      %p805 = scmp.lt.s32.totalorder %s18, 1
      %s806 = scalar_select %p805, %s18, 1
      %p807 = scmp.lt.s32.totalorder %s804, 31
      %s808 = scalar_select %p807, %s804, 31
      %s809 = smul.addr %s806, 32
      %s810 = sadd.s32 %s808, %s809
      %s811 = smul.addr %s810, 8
      %s812 = scalar_lea.vmem %s3, %s811
      // Predicated region
      $region33: #{detection_conv2d_forward.1} parent=31 // pred_check
        %p813 = pneg %p114
      $region34: #{detection_conv2d_forward.1} parent=31 // pred_check_branch
        %815 = sbr.rel (%p813) target = $region36
      $region35: #{detection_conv2d_forward.1} parent=31 // pred_region
        %s816 = smul.u32 16, %s19
      $region36: #{detection_conv2d_forward.1} parent=31 // pred_fallthru
        _
    $region32: #{detection_conv2d_forward.1} parent=5 // pred_fallthru
      _
    %p817 = scmp.le.s32.totalorder 2, %s9
    // Predicated region
    $region37: #{detection_conv2d_forward.1} parent=5 // pred_check
      %p818 = pneg %p817
    $region38: #{detection_conv2d_forward.1} parent=5 // pred_check_branch
      %820 = sbr.rel (%p818) target = $region40
    $region39: #{detection_conv2d_forward.1} parent=5 // pred_region
      %s821 = ssub.s32 %s9, 2
      // Predicated region
      $region41: #{detection_conv2d_forward.1} parent=39 // pred_check
        %p822 = pneg %p120
      $region42: #{detection_conv2d_forward.1} parent=39 // pred_check_branch
        %824 = sbr.rel (%p822) target = $region44
      $region43: #{detection_conv2d_forward.1} parent=39 // pred_region
        %s825 = smul.u32 16, %s21
        %p826 = scmp.lt.s32.totalorder %s20, 1
        %s827 = scalar_select %p826, %s20, 1
        %p828 = scmp.lt.s32.totalorder %s825, 31
        %s829 = scalar_select %p828, %s825, 31
        %s830 = smul.addr %s827, 32
        %s831 = sadd.s32 %s829, %s830
        %s832 = smul.addr %s831, 8
        %s833 = scalar_lea.vmem %s3, %s832
      $region44: #{detection_conv2d_forward.1} parent=39 // pred_fallthru
        _
    $region40: #{detection_conv2d_forward.1} parent=5 // pred_fallthru
      _
  $region6: #{detection_conv2d_forward.1} parent=0 // loop_footer
    %s13 = sadd.s32 1, %s9
  $region7: #{detection_conv2d_forward.1} parent=0 // loop_footer_branch
    %8 = sbr.rel target = $region3
  $region8: #{detection_conv2d_forward.1} parent=0 // loop_exit
    _

</llo_original>
